<compile_context>
chip_gen: v6e
topology: v6e:2x2x1
jax: 0.10.0
libtpu: 0.0.40
codegen_flags: <defaults>
</compile_context>

<pallas_src>
import functools

import numpy as np
import jax
import jax.numpy as jnp
from jax.experimental import pallas as pl
from jax.experimental.pallas import tpu as pltpu

_LANES = 128  # lane-dense packed-output width


def _round_up(n, m):
    return ((n + m - 1) // m) * m


def _dual_scorer_kernel(x_ref, w1_ref, w2_ref, out_ref, *, hs_pad):
    x = x_ref[...]                                                    # (B, D)

    # Single fused MXU pass over both scorers' hidden units (N = hs_pad + hl_pad).
    h = jnp.maximum(
        jnp.dot(x, w1_ref[...], preferred_element_type=jnp.float32), 0.0)
    hw = h * w2_ref[...]                                              # VPU

    # One lane-reduce per scorer over its 128-aligned lane half (XLU).
    logit_s = jnp.sum(hw[:, :hs_pad], axis=-1, keepdims=True)         # (B, 1)
    logit_l = jnp.sum(hw[:, hs_pad:], axis=-1, keepdims=True)         # (B, 1)

    # Exact, bounded sigmoid via tanh (EUP slot is free here; no approx recip).
    probs_s = 0.5 * (jnp.tanh(0.5 * logit_s) + 1.0)
    probs_l = 0.5 * (jnp.tanh(0.5 * logit_l) + 1.0)

    # preds from logit > 0 keeps the strict "probs > 0.5" semantics exactly.
    preds_s = (logit_s > 0.0).astype(jnp.float32)
    preds_l = (logit_l > 0.0).astype(jnp.float32)

    # Pack the four per-example scalars into distinct lane columns of a single
    # lane-dense f32 slab: lanes 0..3 = probs_s, probs_l, preds_s, preds_l.
    B, L = out_ref.shape
    lane = jax.lax.broadcasted_iota(jnp.int32, (B, L), 1)
    out = jnp.where(lane == 0, probs_s, 0.0)
    out = jnp.where(lane == 1, probs_l, out)
    out = jnp.where(lane == 2, preds_s, out)
    out = jnp.where(lane == 3, preds_l, out)
    out_ref[...] = out


@functools.partial(jax.jit, static_argnames=("hs_pad",))
def dual_score(x, w1_comb, w2_comb, *, hs_pad):
    """One fused pallas_call: both scorers over the full batch.

    Returns a (B, 128) f32 slab; lanes 0..3 carry
    probs_small, probs_large, preds_small, preds_large.
    """
    B, D = x.shape
    H = w1_comb.shape[1]

    flops = 2 * B * D * H + 4 * B * H               # matmul + relu/mul/reduce
    bytes_accessed = 4 * (x.size + w1_comb.size + w2_comb.size + B * _LANES)

    return pl.pallas_call(
        functools.partial(_dual_scorer_kernel, hs_pad=hs_pad),
        out_shape=jax.ShapeDtypeStruct((B, _LANES), jnp.float32),
        cost_estimate=pl.CostEstimate(
            flops=flops, transcendentals=2 * B, bytes_accessed=bytes_accessed),
    )(x, w1_comb, w2_comb)


class PallasScorer:
    """Weight container for one scorer (w2 kept as a lane-friendly (1, H) row)."""

    def __init__(self, key, in_dim, hidden):
        k1, k2 = jax.random.split(key)
        self.in_dim = in_dim
        self.hidden = hidden
        self.w1 = (jax.random.normal(k1, (in_dim, hidden), jnp.float32)
                   / np.sqrt(in_dim))
        self.w2_row = (jax.random.normal(k2, (1, hidden), jnp.float32)
                       / np.sqrt(hidden))


class RandomModelPallas:
    """Mirror of RandomModel.forward using a single fused Pallas launch."""

    def __init__(self, small_model, large_model):
        self.small_model = small_model
        self.large_model = large_model

        # Pre-concatenate the two scorers into one lane-padded weight block.
        D = small_model.in_dim
        HS, HL = small_model.hidden, large_model.hidden
        self.hs_pad = _round_up(HS, _LANES)
        hl_pad = _round_up(HL, _LANES)
        H = self.hs_pad + hl_pad

        w1 = jnp.zeros((D, H), jnp.float32)
        w1 = w1.at[:, :HS].set(small_model.w1)
        w1 = w1.at[:, self.hs_pad:self.hs_pad + HL].set(large_model.w1)
        w2 = jnp.zeros((1, H), jnp.float32)
        w2 = w2.at[:, :HS].set(small_model.w2_row)
        w2 = w2.at[:, self.hs_pad:self.hs_pad + HL].set(large_model.w2_row)
        # Zero-padded columns produce relu(0)*0 == 0, so logits are exact.
        self.w1_comb = w1
        self.w2_comb = w2

    @staticmethod
    def _features(prompts, responses):
        p = jnp.asarray(prompts, jnp.float32)
        if responses is not None:
            r = jnp.asarray(responses, jnp.float32)
            return jnp.concatenate([p, r], axis=-1)
        return p

    def forward(self, prompts, responses, labels, rng):
        labels = np.asarray(labels, dtype=np.int64)
        x = self._features(prompts, responses)
        B = x.shape[0]

        # Single fused kernel over the full batch for BOTH scorers.  Fixed
        # shapes every call -> no recompiles, one launch, ONE D2H transfer.
        packed = dual_score(x, self.w1_comb, self.w2_comb, hs_pad=self.hs_pad)
        packed = np.asarray(jax.block_until_ready(packed))

        probs_s = packed[:, 0]
        probs_l = packed[:, 1]
        preds_s = packed[:, 2].astype(np.int64)
        preds_l = packed[:, 3].astype(np.int64)

        # Host-side random routing (mirrors torch.rand on CPU); no device sync.
        large_mask = rng.random(B) < 0.5
        small_mask = ~large_mask
        num_large = int(large_mask.sum())

        if small_mask.any():
            small_results = {
                "probs": probs_s[small_mask],
                "preds": preds_s[small_mask],
                "final_labels": labels[small_mask],
            }
        else:
            small_results = {"probs": None, "preds": None, "final_labels": None}

        if num_large > 0:
            large_results = {
                "probs": probs_l[large_mask],
                "preds": preds_l[large_mask],
                "final_labels": labels[large_mask],
            }
        else:
            large_results = {"probs": None, "preds": None, "final_labels": None}

        final_results = {"num_large": num_large}
        for k in small_results.keys():
            agg = [small_results[k], large_results[k]]
            final_results[k] = np.concatenate([v for v in agg if v is not None])
        return final_results

    def get_decision(self, prompts, rng):
        n = len(prompts)
        large_mask = rng.random(n) < 0.5
        probs = np.full(n, 0.5, dtype=np.float32)
        return large_mask.astype(np.int64), probs


if __name__ == "__main__":
    key = jax.random.PRNGKey(0)
    k_p, k_r, k_small, k_large = jax.random.split(key, 4)

    B, DP, DR = 8, 16, 16          # batch, prompt-feature dim, response-feature dim
    H_SMALL, H_LARGE = 32, 128     # hidden widths of the two scorers

    prompts = jax.random.normal(k_p, (B, DP), jnp.float32)
    responses = jax.random.normal(k_r, (B, DR), jnp.float32)
    labels = np.array([0, 1, 0, 1, 1, 0, 1, 0], dtype=np.int64)

    small_model = PallasScorer(k_small, DP + DR, H_SMALL)
    large_model = PallasScorer(k_large, DP + DR, H_LARGE)
    model = RandomModelPallas(small_model, large_model)

    rng = np.random.default_rng(0)
    out = model.forward(prompts, responses, labels, rng)

    # Cross-check the fused/packed kernel against a plain-JAX reference.
    x_ref = np.concatenate([np.asarray(prompts), np.asarray(responses)], axis=-1)
    def ref_scorer(xw1, xw2):
        h = np.maximum(x_ref @ np.asarray(xw1), 0.0)
        return (h * np.asarray(xw2)).sum(-1)
    logit_s_ref = ref_scorer(small_model.w1, small_model.w2_row)
    logit_l_ref = ref_scorer(large_model.w1, large_model.w2_row)
    packed = np.asarray(jax.block_until_ready(
        dual_score(jnp.asarray(x_ref), model.w1_comb, model.w2_comb,
                   hs_pad=model.hs_pad)))
    np.testing.assert_allclose(packed[:, 0], 1.0 / (1.0 + np.exp(-logit_s_ref)),
                               rtol=1e-5, atol=1e-5)
    np.testing.assert_allclose(packed[:, 1], 1.0 / (1.0 + np.exp(-logit_l_ref)),
                               rtol=1e-5, atol=1e-5)
    np.testing.assert_array_equal(packed[:, 2] > 0.5, logit_s_ref > 0.0)
    np.testing.assert_array_equal(packed[:, 3] > 0.5, logit_l_ref > 0.0)

    # basic sanity: every example is accounted for exactly once
    assert out["probs"].shape == (B,)
    assert out["preds"].shape == (B,)
    assert out["final_labels"].shape == (B,)
    assert np.all((out["probs"] >= 0.0) & (out["probs"] <= 1.0))
    assert np.all((out["preds"] == 0) | (out["preds"] == 1))
    assert 0 <= out["num_large"] <= B

    dec, dec_probs = model.get_decision(prompts, np.random.default_rng(1))
    assert dec.shape == (B,) and dec_probs.shape == (B,)

    print("KERNEL_OK")
</pallas_src>

<mosaic_0001>
module attributes {stable_mosaic.version = 11 : i64} {
  func.func @_dual_scorer_kernel(%arg0: memref<8x32xf32, #tpu.memory_space<vmem>>, %arg1: memref<32x256xf32, #tpu.memory_space<vmem>>, %arg2: memref<1x256xf32, #tpu.memory_space<vmem>>, %arg3: memref<8x128xf32, #tpu.memory_space<vmem>>) attributes {dimension_semantics = [], scalar_prefetch = 0 : i64, scratch_operands = 0 : i64, tpu.core_type = #tpu.core_type<tc>} {
    %c0 = arith.constant 0 : index
    %c0_0 = arith.constant 0 : index
    %0 = vector.load %arg0[%c0, %c0_0] : memref<8x32xf32, #tpu.memory_space<vmem>>, vector<8x32xf32>
    %c0_1 = arith.constant 0 : index
    %c0_2 = arith.constant 0 : index
    %1 = vector.load %arg1[%c0_1, %c0_2] : memref<32x256xf32, #tpu.memory_space<vmem>>, vector<32x256xf32>
    %cst = arith.constant dense<0.000000e+00> : vector<8x256xf32>
    %2 = tpu.matmul %0, %1, %cst {dimension_numbers = #tpu.dot_dimension_numbers<[1], [0], [0], [1], [0, 0, 1, 1], [], []>} : vector<8x32xf32>, vector<32x256xf32>, vector<8x256xf32> -> vector<8x256xf32>
    %cst_3 = arith.constant 0.000000e+00 : f32
    %3 = vector.broadcast %cst_3 : f32 to vector<8x256xf32>
    %4 = arith.maximumf %2, %3 : vector<8x256xf32>
    %c0_4 = arith.constant 0 : index
    %c0_5 = arith.constant 0 : index
    %5 = vector.load %arg2[%c0_4, %c0_5] : memref<1x256xf32, #tpu.memory_space<vmem>>, vector<1x256xf32>
    %6 = vector.broadcast %5 : vector<1x256xf32> to vector<8x256xf32>
    %7 = arith.mulf %4, %6 : vector<8x256xf32>
    %8 = vector.extract_strided_slice %7 {offsets = [0, 0], sizes = [8, 128], strides = [1, 1]} : vector<8x256xf32> to vector<8x128xf32>
    %cst_6 = arith.constant dense<0.000000e+00> : vector<8xf32>
    %9 = vector.multi_reduction <add>, %8, %cst_6 [1] : vector<8x128xf32> to vector<8xf32>
    %10 = vector.shape_cast %9 : vector<8xf32> to vector<8x1xf32>
    %11 = vector.extract_strided_slice %7 {offsets = [0, 128], sizes = [8, 128], strides = [1, 1]} : vector<8x256xf32> to vector<8x128xf32>
    %cst_7 = arith.constant dense<0.000000e+00> : vector<8xf32>
    %12 = vector.multi_reduction <add>, %11, %cst_7 [1] : vector<8x128xf32> to vector<8xf32>
    %13 = vector.shape_cast %12 : vector<8xf32> to vector<8x1xf32>
    %cst_8 = arith.constant 5.000000e-01 : f32
    %14 = vector.broadcast %cst_8 : f32 to vector<8x1xf32>
    %15 = arith.mulf %14, %10 : vector<8x1xf32>
    %16 = math.tanh %15 : vector<8x1xf32>
    %cst_9 = arith.constant 1.000000e+00 : f32
    %17 = vector.broadcast %cst_9 : f32 to vector<8x1xf32>
    %18 = arith.addf %16, %17 : vector<8x1xf32>
    %cst_10 = arith.constant 5.000000e-01 : f32
    %19 = vector.broadcast %cst_10 : f32 to vector<8x1xf32>
    %20 = arith.mulf %19, %18 : vector<8x1xf32>
    %cst_11 = arith.constant 5.000000e-01 : f32
    %21 = vector.broadcast %cst_11 : f32 to vector<8x1xf32>
    %22 = arith.mulf %21, %13 : vector<8x1xf32>
    %23 = math.tanh %22 : vector<8x1xf32>
    %cst_12 = arith.constant 1.000000e+00 : f32
    %24 = vector.broadcast %cst_12 : f32 to vector<8x1xf32>
    %25 = arith.addf %23, %24 : vector<8x1xf32>
    %cst_13 = arith.constant 5.000000e-01 : f32
    %26 = vector.broadcast %cst_13 : f32 to vector<8x1xf32>
    %27 = arith.mulf %26, %25 : vector<8x1xf32>
    %cst_14 = arith.constant 0.000000e+00 : f32
    %28 = vector.broadcast %cst_14 : f32 to vector<8x1xf32>
    %29 = arith.cmpf ogt, %10, %28 : vector<8x1xf32>
    %30 = arith.extui %29 : vector<8x1xi1> to vector<8x1xi32>
    %31 = arith.sitofp %30 : vector<8x1xi32> to vector<8x1xf32>
    %cst_15 = arith.constant 0.000000e+00 : f32
    %32 = vector.broadcast %cst_15 : f32 to vector<8x1xf32>
    %33 = arith.cmpf ogt, %13, %32 : vector<8x1xf32>
    %34 = arith.extui %33 : vector<8x1xi1> to vector<8x1xi32>
    %35 = arith.sitofp %34 : vector<8x1xi32> to vector<8x1xf32>
    %36 = tpu.iota {dimensions = array<i32: 1>} : vector<8x128xi32>
    %c0_i32 = arith.constant 0 : i32
    %37 = vector.broadcast %c0_i32 : i32 to vector<8x128xi32>
    %38 = arith.cmpi eq, %36, %37 : vector<8x128xi32>
    %cst_16 = arith.constant 0.000000e+00 : f32
    %39 = vector.shape_cast %20 : vector<8x1xf32> to vector<8x1xf32>
    %40 = vector.broadcast %39 : vector<8x1xf32> to vector<8x128xf32>
    %41 = vector.broadcast %cst_16 : f32 to vector<8x128xf32>
    %42 = arith.select %38, %40, %41 : vector<8x128xi1>, vector<8x128xf32>
    %c1_i32 = arith.constant 1 : i32
    %43 = vector.broadcast %c1_i32 : i32 to vector<8x128xi32>
    %44 = arith.cmpi eq, %36, %43 : vector<8x128xi32>
    %45 = vector.shape_cast %27 : vector<8x1xf32> to vector<8x1xf32>
    %46 = vector.broadcast %45 : vector<8x1xf32> to vector<8x128xf32>
    %47 = arith.select %44, %46, %42 : vector<8x128xi1>, vector<8x128xf32>
    %c2_i32 = arith.constant 2 : i32
    %48 = vector.broadcast %c2_i32 : i32 to vector<8x128xi32>
    %49 = arith.cmpi eq, %36, %48 : vector<8x128xi32>
    %50 = vector.shape_cast %31 : vector<8x1xf32> to vector<8x1xf32>
    %51 = vector.broadcast %50 : vector<8x1xf32> to vector<8x128xf32>
    %52 = arith.select %49, %51, %47 : vector<8x128xi1>, vector<8x128xf32>
    %c3_i32 = arith.constant 3 : i32
    %53 = vector.broadcast %c3_i32 : i32 to vector<8x128xi32>
    %54 = arith.cmpi eq, %36, %53 : vector<8x128xi32>
    %55 = vector.shape_cast %35 : vector<8x1xf32> to vector<8x1xf32>
    %56 = vector.broadcast %55 : vector<8x1xf32> to vector<8x128xf32>
    %57 = arith.select %54, %56, %52 : vector<8x128xi1>, vector<8x128xf32>
    %c0_17 = arith.constant 0 : index
    %c0_18 = arith.constant 0 : index
    %58 = vector.load %arg3[%c0_17, %c0_18] : memref<8x128xf32, #tpu.memory_space<vmem>>, vector<8x128xf32>
    tpu.vector_store %arg3[%c0_17, %c0_18], %57 {strides = array<i32>} : memref<8x128xf32, #tpu.memory_space<vmem>>, vector<8x128xf32>,
    return
  }
}

</mosaic_0001>

<llo_original>
// kernel: dual_score.1
$region0: #{dual_score.1}
  #allocation0 [shape = 'u32[]', space=smem, size = 0x4, offset = 0x4, fixed_abs, tag = 'smem constant byte address 0x4 - core index']
  #allocation1 [shape = 'u32[144,128]{1,0:T(1,128)}', space=vmem, size = 0x12000, scoped, tag = 'internal scratch']
  %s0 = inlined_call_operand.hbm [shape: f32[8,32], index: 0, kind: input, shape index: {}]
  %s1 = inlined_call_operand.hbm [shape: f32[32,256], index: 1, kind: input, shape index: {}]
  %s2 = inlined_call_operand.vmem [shape: f32[1,256], index: 2, kind: input, shape index: {}]
  %s3 = inlined_call_operand.hbm [shape: f32[8,128], index: 3, kind: output, shape index: {}]
  %s4 = sld [smem:[#allocation0]]
  $region30: #{dual_score.1} parent=0
    _
  %s6 = ssub.s32 1, %s4
  %s7 = scalar_select 0, %s6, %s4
  $region1: #{dual_score.1} parent=0
    #allocation2 [shape = 'u8[4096]{0}', space=vmem, size = 0x1000, scoped, tag = 'input window, operand 0, single buffered']
    #allocation3 [shape = 's32[1]{0}', space=sflag, size = 0x4, scoped, tag = 'scoped memory for dual_score.1']
    #allocation4 [shape = 's32[1]{0}', space=sflag, size = 0x4, scoped, tag = 'scoped memory for dual_score.1']
    #allocation5 [shape = 'u8[32768]{0}', space=vmem, size = 0x8000, scoped, tag = 'input window, operand 1, single buffered']
    #allocation6 [shape = 's32[1]{0}', space=sflag, size = 0x4, scoped, tag = 'scoped memory for dual_score.1']
    #allocation7 [shape = 'u8[4096]{0}', space=vmem, size = 0x1000, scoped, tag = 'output window, operand 0, single buffered']
    %8 = vsyncpa [#allocation3], 0
    %9 = vsyncpa [#allocation6], 0
    %10 = vsyncpa [#allocation4], 0
    // Predicated region
    $region2: #{dual_score.1} parent=1 // pred_check
      _
    $region3: #{dual_score.1} parent=1 // pred_check_branch
      %12 = sbr.rel (0) target = $region5
    $region4: #{dual_score.1} parent=1 // pred_region
      %s14 = ssub.s32 128, 128
      %15 = vsyncadd [#allocation3], %s14
      %s17 = sshll.u32 [#allocation2], 4
      %s18 = int_to_ptr.vmem [resolvable:$true] %s17
      %20 = dma.hbm_to_vmem [thread:$0]  %s0, 128, %s18, [#allocation3]
    $region5: #{dual_score.1} parent=1 // pred_fallthru
      _
    // Predicated region
    $region6: #{dual_score.1} parent=1 // pred_check
      _
    $region7: #{dual_score.1} parent=1 // pred_check_branch
      %22 = sbr.rel (0) target = $region9
    $region8: #{dual_score.1} parent=1 // pred_region
      %s24 = ssub.s32 1024, 1024
      %25 = vsyncadd [#allocation6], %s24
      %s26 = sshll.u32 [#allocation5], 4
      %s27 = int_to_ptr.vmem [resolvable:$true] %s26
      %32 = dma.hbm_to_vmem [thread:$0]  %s1, 1024, %s27, [#allocation6], 256, 256, 16
    $region9: #{dual_score.1} parent=1 // pred_fallthru
      _
    // Predicated region
    $region10: #{dual_score.1} parent=1 // pred_check
      _
    $region11: #{dual_score.1} parent=1 // pred_check_branch
      %34 = sbr.rel (0) target = $region13
    $region12: #{dual_score.1} parent=1 // pred_region
      _
    $region13: #{dual_score.1} parent=1 // pred_fallthru
      _
    // Predicated region
    $region14: #{dual_score.1} parent=1 // pred_check
      _
    $region15: #{dual_score.1} parent=1 // pred_check_branch
      %36 = sbr.rel (0) target = $region17
    $region16: #{dual_score.1} parent=1 // pred_region
      %37 = dma.done [#allocation3], 128
    $region17: #{dual_score.1} parent=1 // pred_fallthru
      _
    // Predicated region
    $region18: #{dual_score.1} parent=1 // pred_check
      _
    $region19: #{dual_score.1} parent=1 // pred_check_branch
      %39 = sbr.rel (0) target = $region21
    $region20: #{dual_score.1} parent=1 // pred_region
      %40 = dma.done [#allocation6], 1024
    $region21: #{dual_score.1} parent=1 // pred_fallthru
      _
    %v41 = vld [vmem:[#allocation2] sm:$0xff]
    %v42 = vld [vmem:[#allocation5] sm:$0xff]
    %v43 = vld [vmem:[#allocation5 + $0x8] sm:$0xff]
    %v44 = vld [vmem:[#allocation5 + $0x10] sm:$0xff]
    %v45 = vld [vmem:[#allocation5 + $0x18] sm:$0xff]
    %v46 = vld [vmem:[#allocation5 + $0x20] sm:$0xff]
    %v47 = vld [vmem:[#allocation5 + $0x28] sm:$0xff]
    %v48 = vld [vmem:[#allocation5 + $0x30] sm:$0xff]
    %v49 = vld [vmem:[#allocation5 + $0x38] sm:$0xff]
    %vm50 = vcmask 261120
    %v52 = vsel %vm50, %v41, 0
    %54 = vmatprep.subr.mxu0 0.0
    %55 = vmatpush1.msra.mxu0 0.0
    %56 = vmatprep.subr.mxu0 0.0
    %57 = vmatpush1.msra.mxu0 0.0
    %58 = vmatprep.subr.mxu0 0.0
    %59 = vmatpush1.msra.mxu0 0.0
    %60 = vmatprep.subr.mxu0 0.0
    %61 = vmatpush1.msra.mxu0 0.0
    %62 = vmatprep.subr.mxu0 0.0
    %63 = vmatpush1.msra.mxu0 0.0
    %64 = vmatprep.subr.mxu0 0.0
    %65 = vmatpush1.msra.mxu0 0.0
    %66 = vmatprep.subr.mxu0 0.0
    %67 = vmatpush1.msra.mxu0 0.0
    %68 = vmatprep.subr.mxu0 0.0
    %69 = vmatpush1.msra.mxu0 0.0
    %70 = vmatprep.subr.mxu0 0.0
    %71 = vmatpush1.msra.mxu0 0.0
    %72 = vmatprep.subr.mxu0 0.0
    %73 = vmatpush1.msra.mxu0 0.0
    %74 = vmatprep.subr.mxu0 0.0
    %75 = vmatpush1.msra.mxu0 0.0
    %76 = vmatprep.subr.mxu0 0.0
    %77 = vmatpush1.msra.mxu0 0.0
    %78 = vmatprep.subr.mxu0 %v49
    %79 = vmatpush1.msra.mxu0 %v48
    %80 = vmatprep.subr.mxu0 %v47
    %81 = vmatpush1.msra.mxu0 %v46
    %82 = vmatprep.subr.mxu0 %v45
    %83 = vmatpush1.msra.mxu0 %v44
    %84 = vmatprep.subr.mxu0 %v43
    %85 = vmatpush1.msra.mxu0 %v42
    %86 = vmatprep.subr.mxu0 0.0
    %87 = vmatpush2.msra.mxu0 0.0
    %88 = vmatprep.subr.mxu0 0.0
    %89 = vmatpush2.msra.mxu0 0.0
    %90 = vmatprep.subr.mxu0 0.0
    %91 = vmatpush2.msra.mxu0 0.0
    %92 = vmatprep.subr.mxu0 0.0
    %93 = vmatpush2.msra.mxu0 0.0
    %94 = vmatprep.subr.mxu0 0.0
    %95 = vmatpush2.msra.mxu0 0.0
    %96 = vmatprep.subr.mxu0 0.0
    %97 = vmatpush2.msra.mxu0 0.0
    %98 = vmatprep.subr.mxu0 0.0
    %99 = vmatpush2.msra.mxu0 0.0
    %100 = vmatprep.subr.mxu0 0.0
    %101 = vmatpush2.msra.mxu0 0.0
    %102 = vmatprep.subr.mxu0 0.0
    %103 = vmatpush2.msra.mxu0 0.0
    %104 = vmatprep.subr.mxu0 0.0
    %105 = vmatpush2.msra.mxu0 0.0
    %106 = vmatprep.subr.mxu0 0.0
    %107 = vmatpush2.msra.mxu0 0.0
    %108 = vmatprep.subr.mxu0 0.0
    %109 = vmatpush2.msra.mxu0 0.0
    %110 = vmatprep.subr.mxu0 0.0
    %111 = vmatpush2.msra.mxu0 0.0
    %112 = vmatprep.subr.mxu0 0.0
    %113 = vmatpush2.msra.mxu0 0.0
    %114 = vmatprep.subr.mxu0 0.0
    %115 = vmatpush2.msra.mxu0 0.0
    %116 = vmatprep.subr.mxu0 0.0
    %117 = vmatpush2.msra.mxu0 0.0
    %118 = vmatprep.mubr.f32.mxu0 0.0
    %119 = vmatmul.mubr.f32.gmra.mxu0 %v52
    %v120 = vpop.f32.mrf.mxu0
    %v121 = vadd.f32 0.0, %v120
    %v122 = vpop.f32.mrf.mxu0
    %v123 = vadd.f32 0.0, %v122
    %124 = vdwg.mxu0
    %v125 = vmax.f32 %v121, 0.0
    %v126 = vmax.f32 %v123, 0.0
    %v127 = vld [vmem:[%s2] sm:$0x3]
    %v129 = vlaneseq
    %v130 = vshrl.u32 %v129, 7
    %v131 = vsub.s32 0, %v130
    %v132 = vrot.slane %v127, %v131
    %v133 = vlaneseq
    %v134 = vshrl.u32 %v133, 7
    %v135 = vsub.s32 1, %v134
    %v136 = vrot.slane %v127, %v135
    %v139 = vmul.f32 %v125, %v132
    %v140 = vmul.f32 %v126, %v136
    %141 = vadd.xlane.f32.xlu0 %v139
    %v142 = vpop.xlane.xlu0 %141
    %143 = vadd.xlane.f32.xlu0 %v140
    %v144 = vpop.xlane.xlu0 %143
    %v145 = vmul.f32 %v142, 0.5
    %v146 = vtanh.pop %v145
    %v147 = vadd.f32 %v146, 1.0
    %v148 = vmul.f32 %v147, 0.5
    %v149 = vmul.f32 %v144, 0.5
    %v150 = vtanh.pop %v149
    %v151 = vadd.f32 %v150, 1.0
    %v152 = vmul.f32 %v151, 0.5
    %vm153 = vcmp.gt.f32.partialorder %v142, 0.0
    %v154 = vsel %vm153, 1, 0
    %v155 = vcvt.s32.f32 %v154
    %vm156 = vcmp.gt.f32.partialorder %v144, 0.0
    %v157 = vsel %vm156, 1, 0
    %v158 = vcvt.s32.f32 %v157
    %v159 = vlaneseq
    %v160 = vand.u32 %v159, 127
    %vm161 = vcmp.eq.s32.totalorder %v160, 0
    %v162 = vsel %vm161, %v148, 0.0
    %vm163 = vcmp.eq.s32.totalorder %v160, 1
    %v164 = vsel %vm163, %v152, %v162
    %vm165 = vcmp.eq.s32.totalorder %v160, 2
    %v166 = vsel %vm165, %v155, %v164
    %vm167 = vcmp.eq.s32.totalorder %v160, 3
    %v168 = vsel %vm167, %v158, %v166
    %169 = vst [vmem:[#allocation7] sm:$0xff] %v168
    // Predicated region
    $region22: #{dual_score.1} parent=1 // pred_check
      _
    $region23: #{dual_score.1} parent=1 // pred_check_branch
      %171 = sbr.rel (0) target = $region25
    $region24: #{dual_score.1} parent=1 // pred_region
      %s173 = ssub.s32 128, 128
      %174 = vsyncadd [#allocation4], %s173
      %s176 = sshll.u32 [#allocation7], 4
      %s177 = int_to_ptr.vmem [resolvable:$true] %s176
      %179 = dma.vmem_to_hbm [thread:$0]  %s177, 128, %s3, [#allocation4]
    $region25: #{dual_score.1} parent=1 // pred_fallthru
      _
    // Predicated region
    $region26: #{dual_score.1} parent=1 // pred_check
      _
    $region27: #{dual_score.1} parent=1 // pred_check_branch
      %181 = sbr.rel (0) target = $region29
    $region28: #{dual_score.1} parent=1 // pred_region
      %182 = dma.done [#allocation4], 128
    $region29: #{dual_score.1} parent=1 // pred_fallthru
      _
    %183 = vsyncpa [#allocation3], 1
    %184 = vsyncpa [#allocation6], 1
    %185 = vsyncpa [#allocation4], 1

</llo_original>
